<compile_context>
chip_gen: v7x
topology: tpu7x:2x2x1
jax: 0.10.0
libtpu: 0.0.40
codegen_flags: <defaults>
</compile_context>

<pallas_src>
import jax
import jax.numpy as jnp
from jax import lax
from jax.experimental import pallas as pl
from jax.experimental.pallas import tpu as pltpu


def _round_up(v, m):
    return ((v + m - 1) // m) * m


def _largest_divisor_tile(total, unit, cap):
    """Largest multiple of `unit` that divides `total` and is <= cap (total % unit == 0)."""
    q = total // unit
    cap_q = max(1, cap // unit)
    best = 1
    d = 1
    while d * d <= q:
        if q % d == 0:
            for cand in (d, q // d):
                if cand <= cap_q and cand > best:
                    best = cand
        d += 1
    return unit * best


def _make_edge_scorer_kernel(row_blk, use_bf16_tanh):
    """Kernel for one (TM, TH) output tile: out[m, h] = sum_k w[k]*tanh(mod[m,k]+head_t[k,h]) + b."""

    def kernel(mod_ref, head_t_ref, w_ref, b_ref, out_ref):
        hd = head_t_ref.shape[0]           # static hidden dim
        tm, th = out_ref.shape
        n_row_blocks = tm // row_blk
        bias = b_ref[0]                    # SMEM scalar read, hoisted out of all loops

        def accumulate(k, acc, m0):
            # (ROW_BLK, 1) column of the modifier projection -> broadcasts over lanes.
            mod_col = mod_ref[pl.ds(m0, row_blk), pl.ds(k, 1)]
            # (1, TH) row of the (pre-transposed) head projection -> broadcasts over sublanes.
            # TODO(synk): could fold this sublane broadcast into the load with a
            # stride-0 pl.ds once verified on the target toolchain (few-% vld/XLU win).
            head_row = head_t_ref[pl.ds(k, 1), :]
            z = mod_col + head_row
            if use_bf16_tanh:
                # v6e/v7x only: ~2x EUP throughput, accuracy drops to ~1e-2.
                t = jnp.tanh(z.astype(jnp.bfloat16)).astype(jnp.float32)
            else:
                t = jnp.tanh(z)
            return acc + w_ref[k] * t      # tanh on EUP, mul/add on VPU, no XLU reduce

        @pl.loop(0, n_row_blocks)
        def _(rb):
            m0 = pl.multiple_of(rb * row_blk, row_blk)
            # Bias folded into the accumulator init; the (ROW_BLK, TH) accumulator
            # lives entirely in vregs and is stored exactly once per row block.
            acc = jnp.full((row_blk, th), bias, dtype=jnp.float32)
            if hd <= 64:
                for k in range(hd):        # small static Hd: fully unrolled fma chain
                    acc = accumulate(k, acc, m0)
            else:
                acc = lax.fori_loop(0, hd,
                                    lambda k, a: accumulate(k, a, m0),
                                    acc, unroll=4)
            out_ref[pl.ds(m0, row_blk), :] = acc.astype(out_ref.dtype)

    return kernel


def edge_scorer_forward(word_encoding, w_head, w_mod, b_mod, w_fc1, b_fc1,
                        *, tile_m=256, tile_h=1024, row_block=8,
                        use_bf16_tanh=False):
    """word_encoding: (1, N, D) -> (N, N) scores, out[m, h] = fc1(tanh(head_h + mod_m))."""
    x = word_encoding[0].astype(jnp.float32)                              # (N, D)
    N, _ = x.shape
    Hd = w_head.shape[0]

    # Hoisted projections: a rounding error in FLOPs vs the O(N^2*Hd) pairwise part,
    # and they keep x / W_head / W_mod out of the kernel's VMEM footprint.
    head = x @ w_head.T.astype(jnp.float32)                               # (N, Hd)
    mod = x @ w_mod.T.astype(jnp.float32) + b_mod.astype(jnp.float32)     # (N, Hd)

    # Minimum hardware padding only: head axis (output lanes) -> multiple of 128,
    # mod axis (output sublanes) -> multiple of 8.  Tiles are divisors of the padded
    # extents, so no extra padded tile band is ever computed.
    Nm = _round_up(N, 8)
    Nh = _round_up(N, 128)
    TM = _largest_divisor_tile(Nm, 8, max(8, tile_m))
    TH = _largest_divisor_tile(Nh, 128, max(128, tile_h))

    # v7x megacore: both grid axes are "parallel" (sharded over the 2 TensorCores);
    # a (1, 1) grid would leave one core idle, so split an axis when feasible.
    if Nm // TM == 1 and Nh // TH == 1:
        if Nm >= 16:
            TM = _largest_divisor_tile(Nm, 8, max(8, Nm // 2))
        elif Nh >= 256:
            TH = _largest_divisor_tile(Nh, 128, max(128, Nh // 2))

    row_blk = min(row_block, TM)
    assert TM % row_blk == 0  # TM and row_blk are both multiples of 8 with row_blk <= TM

    head_t = jnp.pad(head.T, ((0, 0), (0, Nh - N)))           # (Hd, Nh)  head on lanes
    mod_p = jnp.pad(mod, ((0, Nm - N), (0, 0)))               # (Nm, Hd)

    w = w_fc1.reshape(Hd).astype(jnp.float32)                 # (Hd,) -> SMEM
    b = b_fc1.reshape(1).astype(jnp.float32)                  # (1,)  -> SMEM

    grid = (Nm // TM, Nh // TH)
    smem = pl.BlockSpec(memory_space=pltpu.MemorySpace.SMEM)

    out = pl.pallas_call(
        _make_edge_scorer_kernel(row_blk, use_bf16_tanh),
        out_shape=jax.ShapeDtypeStruct((Nm, Nh), jnp.float32),
        grid_spec=pltpu.PrefetchScalarGridSpec(
            num_scalar_prefetch=0,
            grid=grid,
            in_specs=[
                pl.BlockSpec((TM, Hd), lambda i, j: (i, 0)),   # modifier row tile
                pl.BlockSpec((Hd, TH), lambda i, j: (0, j)),   # head col tile (transposed)
                smem,                                          # w_fc1 scalars
                smem,                                          # b_fc1 scalar
            ],
            out_specs=pl.BlockSpec((TM, TH), lambda i, j: (i, j)),
        ),
        compiler_params=pltpu.CompilerParams(
            dimension_semantics=("parallel", "parallel"),      # megacore split on v7x
            vmem_limit_bytes=32 * 1024 * 1024,
        ),
    )(mod_p, head_t, w, b)

    return out[:N, :N]


def edge_scorer_reference(word_encoding, w_head, w_mod, b_mod, w_fc1, b_fc1):
    x = word_encoding[0].astype(jnp.float32)
    head = x @ w_head.T                                       # (N, Hd)
    mod = x @ w_mod.T + b_mod                                 # (N, Hd)
    # torch builds scores[i, j] = fc1(tanh(head_i + mod_j)) then transposes -> out[m, h]
    t = jnp.tanh(mod[:, None, :] + head[None, :, :])          # (N_m, N_h, Hd)
    return jnp.sum(t * w_fc1[None, None, :], axis=-1) + b_fc1[0]


if __name__ == "__main__":
    def make_inputs(key, N, D, Hd):
        k_x, k_wh, k_wm, k_bm, k_wf, k_bf = jax.random.split(key, 6)
        word_encoding = jax.random.normal(k_x, (1, N, D), dtype=jnp.float32)
        w_head = jax.random.normal(k_wh, (Hd, D), dtype=jnp.float32) * 0.1   # Linear(D, Hd, bias=False)
        w_mod = jax.random.normal(k_wm, (Hd, D), dtype=jnp.float32) * 0.1    # Linear(D, Hd, bias=True)
        b_mod = jax.random.normal(k_bm, (Hd,), dtype=jnp.float32) * 0.1
        w_fc1 = jax.random.normal(k_wf, (Hd,), dtype=jnp.float32) * 0.1      # Linear(Hd, 1, bias=True)
        b_fc1 = jax.random.normal(k_bf, (1,), dtype=jnp.float32) * 0.1
        return word_encoding, w_head, w_mod, b_mod, w_fc1, b_fc1

    # Small shape consistent with the module: batch=1, num_of_words=8, bilstm_out=32, hidden_dim=32.
    args = make_inputs(jax.random.PRNGKey(0), N=8, D=32, Hd=32)
    out = jax.block_until_ready(edge_scorer_forward(*args))
    ref = edge_scorer_reference(*args)
    assert out.shape == (8, 8)
    assert jnp.allclose(out, ref, atol=1e-5, rtol=1e-4), "mismatch vs reference (N=8)"

    # Multi-tile grid + lane/sublane padding path (grid = (17, 2) with these tiles).
    args2 = make_inputs(jax.random.PRNGKey(1), N=136, D=48, Hd=32)
    out2 = jax.block_until_ready(edge_scorer_forward(*args2, tile_m=64, tile_h=128))
    ref2 = edge_scorer_reference(*args2)
    assert out2.shape == (136, 136)
    assert jnp.allclose(out2, ref2, atol=1e-5, rtol=1e-4), "mismatch vs reference (N=136)"

    # Default tiles: exercises the (1,1)->split megacore path and multi-row-block loop.
    args3 = make_inputs(jax.random.PRNGKey(2), N=200, D=32, Hd=48)
    out3 = jax.block_until_ready(edge_scorer_forward(*args3))
    ref3 = edge_scorer_reference(*args3)
    assert out3.shape == (200, 200)
    assert jnp.allclose(out3, ref3, atol=1e-5, rtol=1e-4), "mismatch vs reference (N=200)"

    # Hd > 64 path (in-kernel lax.fori_loop over the hidden dim).
    args4 = make_inputs(jax.random.PRNGKey(3), N=32, D=16, Hd=96)
    out4 = jax.block_until_ready(edge_scorer_forward(*args4))
    ref4 = edge_scorer_reference(*args4)
    assert out4.shape == (32, 32)
    assert jnp.allclose(out4, ref4, atol=1e-5, rtol=1e-4), "mismatch vs reference (Hd=96)"

    print("KERNEL_OK")
</pallas_src>

<mosaic_0001>
module attributes {stable_mosaic.version = 11 : i64} {
  func.func @kernel(%arg0: i32, %arg1: i32, %arg2: memref<8x32xf32, #tpu.memory_space<vmem>>, %arg3: memref<32x128xf32, #tpu.memory_space<vmem>>, %arg4: memref<32xf32, #tpu.memory_space<smem>>, %arg5: memref<1xf32, #tpu.memory_space<smem>>, %arg6: memref<8x128xf32, #tpu.memory_space<vmem>>) attributes {dimension_semantics = [#tpu.dimension_semantics<parallel>, #tpu.dimension_semantics<parallel>], iteration_bounds = array<i64: 1, 1>, scalar_prefetch = 0 : i64, scratch_operands = 0 : i64, tpu.core_type = #tpu.core_type<tc>, window_params = [{transform_indices = @transform_0, window_bounds = array<i64: 8, 32>}, {transform_indices = @transform_1, window_bounds = array<i64: 32, 128>}, {transform_indices = @transform_2, window_bounds = array<i64: 32>}, {transform_indices = @transform_3, window_bounds = array<i64: 1>}, {transform_indices = @transform_4, window_bounds = array<i64: 8, 128>}]} {
    %c0 = arith.constant 0 : index
    %0 = memref.load %arg5[%c0] : memref<1xf32, #tpu.memory_space<smem>>
    %c0_i32 = arith.constant 0 : i32
    %c1_i32 = arith.constant 1 : i32
    %1 = arith.muli %c0_i32, %c1_i32 : i32
    %c0_i32_0 = arith.constant 0 : i32
    %2 = arith.addi %c0_i32_0, %1 : i32
    %c8_i32 = arith.constant 8 : i32
    %3 = arith.muli %2, %c8_i32 : i32
    %4 = tpu.assume_multiple %3, 8 : i32
    %5 = vector.broadcast %0 : f32 to vector<8x128xf32>
    %6 = arith.index_cast %4 : i32 to index
    %c0_1 = arith.constant 0 : index
    %7 = vector.load %arg2[%6, %c0_1] : memref<8x32xf32, #tpu.memory_space<vmem>>, vector<8x1xf32>
    %c0_2 = arith.constant 0 : index
    %c0_3 = arith.constant 0 : index
    %8 = vector.load %arg3[%c0_2, %c0_3] : memref<32x128xf32, #tpu.memory_space<vmem>>, vector<1x128xf32>
    %9 = vector.broadcast %7 : vector<8x1xf32> to vector<8x128xf32>
    %10 = vector.broadcast %8 : vector<1x128xf32> to vector<8x128xf32>
    %11 = arith.addf %9, %10 : vector<8x128xf32>
    %12 = math.tanh %11 : vector<8x128xf32>
    %c0_4 = arith.constant 0 : index
    %13 = memref.load %arg4[%c0_4] : memref<32xf32, #tpu.memory_space<smem>>
    %14 = vector.broadcast %13 : f32 to vector<8x128xf32>
    %15 = arith.mulf %14, %12 : vector<8x128xf32>
    %16 = arith.addf %5, %15 : vector<8x128xf32>
    %17 = arith.index_cast %4 : i32 to index
    %c1 = arith.constant 1 : index
    %18 = vector.load %arg2[%17, %c1] : memref<8x32xf32, #tpu.memory_space<vmem>>, vector<8x1xf32>
    %c1_5 = arith.constant 1 : index
    %c0_6 = arith.constant 0 : index
    %19 = vector.load %arg3[%c1_5, %c0_6] : memref<32x128xf32, #tpu.memory_space<vmem>>, vector<1x128xf32>
    %20 = vector.broadcast %18 : vector<8x1xf32> to vector<8x128xf32>
    %21 = vector.broadcast %19 : vector<1x128xf32> to vector<8x128xf32>
    %22 = arith.addf %20, %21 : vector<8x128xf32>
    %23 = math.tanh %22 : vector<8x128xf32>
    %c1_7 = arith.constant 1 : index
    %24 = memref.load %arg4[%c1_7] : memref<32xf32, #tpu.memory_space<smem>>
    %25 = vector.broadcast %24 : f32 to vector<8x128xf32>
    %26 = arith.mulf %25, %23 : vector<8x128xf32>
    %27 = arith.addf %16, %26 : vector<8x128xf32>
    %28 = arith.index_cast %4 : i32 to index
    %c2 = arith.constant 2 : index
    %29 = vector.load %arg2[%28, %c2] : memref<8x32xf32, #tpu.memory_space<vmem>>, vector<8x1xf32>
    %c2_8 = arith.constant 2 : index
    %c0_9 = arith.constant 0 : index
    %30 = vector.load %arg3[%c2_8, %c0_9] : memref<32x128xf32, #tpu.memory_space<vmem>>, vector<1x128xf32>
    %31 = vector.broadcast %29 : vector<8x1xf32> to vector<8x128xf32>
    %32 = vector.broadcast %30 : vector<1x128xf32> to vector<8x128xf32>
    %33 = arith.addf %31, %32 : vector<8x128xf32>
    %34 = math.tanh %33 : vector<8x128xf32>
    %c2_10 = arith.constant 2 : index
    %35 = memref.load %arg4[%c2_10] : memref<32xf32, #tpu.memory_space<smem>>
    %36 = vector.broadcast %35 : f32 to vector<8x128xf32>
    %37 = arith.mulf %36, %34 : vector<8x128xf32>
    %38 = arith.addf %27, %37 : vector<8x128xf32>
    %39 = arith.index_cast %4 : i32 to index
    %c3 = arith.constant 3 : index
    %40 = vector.load %arg2[%39, %c3] : memref<8x32xf32, #tpu.memory_space<vmem>>, vector<8x1xf32>
    %c3_11 = arith.constant 3 : index
    %c0_12 = arith.constant 0 : index
    %41 = vector.load %arg3[%c3_11, %c0_12] : memref<32x128xf32, #tpu.memory_space<vmem>>, vector<1x128xf32>
    %42 = vector.broadcast %40 : vector<8x1xf32> to vector<8x128xf32>
    %43 = vector.broadcast %41 : vector<1x128xf32> to vector<8x128xf32>
    %44 = arith.addf %42, %43 : vector<8x128xf32>
    %45 = math.tanh %44 : vector<8x128xf32>
    %c3_13 = arith.constant 3 : index
    %46 = memref.load %arg4[%c3_13] : memref<32xf32, #tpu.memory_space<smem>>
    %47 = vector.broadcast %46 : f32 to vector<8x128xf32>
    %48 = arith.mulf %47, %45 : vector<8x128xf32>
    %49 = arith.addf %38, %48 : vector<8x128xf32>
    %50 = arith.index_cast %4 : i32 to index
    %c4 = arith.constant 4 : index
    %51 = vector.load %arg2[%50, %c4] : memref<8x32xf32, #tpu.memory_space<vmem>>, vector<8x1xf32>
    %c4_14 = arith.constant 4 : index
    %c0_15 = arith.constant 0 : index
    %52 = vector.load %arg3[%c4_14, %c0_15] : memref<32x128xf32, #tpu.memory_space<vmem>>, vector<1x128xf32>
    %53 = vector.broadcast %51 : vector<8x1xf32> to vector<8x128xf32>
    %54 = vector.broadcast %52 : vector<1x128xf32> to vector<8x128xf32>
    %55 = arith.addf %53, %54 : vector<8x128xf32>
    %56 = math.tanh %55 : vector<8x128xf32>
    %c4_16 = arith.constant 4 : index
    %57 = memref.load %arg4[%c4_16] : memref<32xf32, #tpu.memory_space<smem>>
    %58 = vector.broadcast %57 : f32 to vector<8x128xf32>
    %59 = arith.mulf %58, %56 : vector<8x128xf32>
    %60 = arith.addf %49, %59 : vector<8x128xf32>
    %61 = arith.index_cast %4 : i32 to index
    %c5 = arith.constant 5 : index
    %62 = vector.load %arg2[%61, %c5] : memref<8x32xf32, #tpu.memory_space<vmem>>, vector<8x1xf32>
    %c5_17 = arith.constant 5 : index
    %c0_18 = arith.constant 0 : index
    %63 = vector.load %arg3[%c5_17, %c0_18] : memref<32x128xf32, #tpu.memory_space<vmem>>, vector<1x128xf32>
    %64 = vector.broadcast %62 : vector<8x1xf32> to vector<8x128xf32>
    %65 = vector.broadcast %63 : vector<1x128xf32> to vector<8x128xf32>
    %66 = arith.addf %64, %65 : vector<8x128xf32>
    %67 = math.tanh %66 : vector<8x128xf32>
    %c5_19 = arith.constant 5 : index
    %68 = memref.load %arg4[%c5_19] : memref<32xf32, #tpu.memory_space<smem>>
    %69 = vector.broadcast %68 : f32 to vector<8x128xf32>
    %70 = arith.mulf %69, %67 : vector<8x128xf32>
    %71 = arith.addf %60, %70 : vector<8x128xf32>
    %72 = arith.index_cast %4 : i32 to index
    %c6 = arith.constant 6 : index
    %73 = vector.load %arg2[%72, %c6] : memref<8x32xf32, #tpu.memory_space<vmem>>, vector<8x1xf32>
    %c6_20 = arith.constant 6 : index
    %c0_21 = arith.constant 0 : index
    %74 = vector.load %arg3[%c6_20, %c0_21] : memref<32x128xf32, #tpu.memory_space<vmem>>, vector<1x128xf32>
    %75 = vector.broadcast %73 : vector<8x1xf32> to vector<8x128xf32>
    %76 = vector.broadcast %74 : vector<1x128xf32> to vector<8x128xf32>
    %77 = arith.addf %75, %76 : vector<8x128xf32>
    %78 = math.tanh %77 : vector<8x128xf32>
    %c6_22 = arith.constant 6 : index
    %79 = memref.load %arg4[%c6_22] : memref<32xf32, #tpu.memory_space<smem>>
    %80 = vector.broadcast %79 : f32 to vector<8x128xf32>
    %81 = arith.mulf %80, %78 : vector<8x128xf32>
    %82 = arith.addf %71, %81 : vector<8x128xf32>
    %83 = arith.index_cast %4 : i32 to index
    %c7 = arith.constant 7 : index
    %84 = vector.load %arg2[%83, %c7] : memref<8x32xf32, #tpu.memory_space<vmem>>, vector<8x1xf32>
    %c7_23 = arith.constant 7 : index
    %c0_24 = arith.constant 0 : index
    %85 = vector.load %arg3[%c7_23, %c0_24] : memref<32x128xf32, #tpu.memory_space<vmem>>, vector<1x128xf32>
    %86 = vector.broadcast %84 : vector<8x1xf32> to vector<8x128xf32>
    %87 = vector.broadcast %85 : vector<1x128xf32> to vector<8x128xf32>
    %88 = arith.addf %86, %87 : vector<8x128xf32>
    %89 = math.tanh %88 : vector<8x128xf32>
    %c7_25 = arith.constant 7 : index
    %90 = memref.load %arg4[%c7_25] : memref<32xf32, #tpu.memory_space<smem>>
    %91 = vector.broadcast %90 : f32 to vector<8x128xf32>
    %92 = arith.mulf %91, %89 : vector<8x128xf32>
    %93 = arith.addf %82, %92 : vector<8x128xf32>
    %94 = arith.index_cast %4 : i32 to index
    %c8 = arith.constant 8 : index
    %95 = vector.load %arg2[%94, %c8] : memref<8x32xf32, #tpu.memory_space<vmem>>, vector<8x1xf32>
    %c8_26 = arith.constant 8 : index
    %c0_27 = arith.constant 0 : index
    %96 = vector.load %arg3[%c8_26, %c0_27] : memref<32x128xf32, #tpu.memory_space<vmem>>, vector<1x128xf32>
    %97 = vector.broadcast %95 : vector<8x1xf32> to vector<8x128xf32>
    %98 = vector.broadcast %96 : vector<1x128xf32> to vector<8x128xf32>
    %99 = arith.addf %97, %98 : vector<8x128xf32>
    %100 = math.tanh %99 : vector<8x128xf32>
    %c8_28 = arith.constant 8 : index
    %101 = memref.load %arg4[%c8_28] : memref<32xf32, #tpu.memory_space<smem>>
    %102 = vector.broadcast %101 : f32 to vector<8x128xf32>
    %103 = arith.mulf %102, %100 : vector<8x128xf32>
    %104 = arith.addf %93, %103 : vector<8x128xf32>
    %105 = arith.index_cast %4 : i32 to index
    %c9 = arith.constant 9 : index
    %106 = vector.load %arg2[%105, %c9] : memref<8x32xf32, #tpu.memory_space<vmem>>, vector<8x1xf32>
    %c9_29 = arith.constant 9 : index
    %c0_30 = arith.constant 0 : index
    %107 = vector.load %arg3[%c9_29, %c0_30] : memref<32x128xf32, #tpu.memory_space<vmem>>, vector<1x128xf32>
    %108 = vector.broadcast %106 : vector<8x1xf32> to vector<8x128xf32>
    %109 = vector.broadcast %107 : vector<1x128xf32> to vector<8x128xf32>
    %110 = arith.addf %108, %109 : vector<8x128xf32>
    %111 = math.tanh %110 : vector<8x128xf32>
    %c9_31 = arith.constant 9 : index
    %112 = memref.load %arg4[%c9_31] : memref<32xf32, #tpu.memory_space<smem>>
    %113 = vector.broadcast %112 : f32 to vector<8x128xf32>
    %114 = arith.mulf %113, %111 : vector<8x128xf32>
    %115 = arith.addf %104, %114 : vector<8x128xf32>
    %116 = arith.index_cast %4 : i32 to index
    %c10 = arith.constant 10 : index
    %117 = vector.load %arg2[%116, %c10] : memref<8x32xf32, #tpu.memory_space<vmem>>, vector<8x1xf32>
    %c10_32 = arith.constant 10 : index
    %c0_33 = arith.constant 0 : index
    %118 = vector.load %arg3[%c10_32, %c0_33] : memref<32x128xf32, #tpu.memory_space<vmem>>, vector<1x128xf32>
    %119 = vector.broadcast %117 : vector<8x1xf32> to vector<8x128xf32>
    %120 = vector.broadcast %118 : vector<1x128xf32> to vector<8x128xf32>
    %121 = arith.addf %119, %120 : vector<8x128xf32>
    %122 = math.tanh %121 : vector<8x128xf32>
    %c10_34 = arith.constant 10 : index
    %123 = memref.load %arg4[%c10_34] : memref<32xf32, #tpu.memory_space<smem>>
    %124 = vector.broadcast %123 : f32 to vector<8x128xf32>
    %125 = arith.mulf %124, %122 : vector<8x128xf32>
    %126 = arith.addf %115, %125 : vector<8x128xf32>
    %127 = arith.index_cast %4 : i32 to index
    %c11 = arith.constant 11 : index
    %128 = vector.load %arg2[%127, %c11] : memref<8x32xf32, #tpu.memory_space<vmem>>, vector<8x1xf32>
    %c11_35 = arith.constant 11 : index
    %c0_36 = arith.constant 0 : index
    %129 = vector.load %arg3[%c11_35, %c0_36] : memref<32x128xf32, #tpu.memory_space<vmem>>, vector<1x128xf32>
    %130 = vector.broadcast %128 : vector<8x1xf32> to vector<8x128xf32>
    %131 = vector.broadcast %129 : vector<1x128xf32> to vector<8x128xf32>
    %132 = arith.addf %130, %131 : vector<8x128xf32>
    %133 = math.tanh %132 : vector<8x128xf32>
    %c11_37 = arith.constant 11 : index
    %134 = memref.load %arg4[%c11_37] : memref<32xf32, #tpu.memory_space<smem>>
    %135 = vector.broadcast %134 : f32 to vector<8x128xf32>
    %136 = arith.mulf %135, %133 : vector<8x128xf32>
    %137 = arith.addf %126, %136 : vector<8x128xf32>
    %138 = arith.index_cast %4 : i32 to index
    %c12 = arith.constant 12 : index
    %139 = vector.load %arg2[%138, %c12] : memref<8x32xf32, #tpu.memory_space<vmem>>, vector<8x1xf32>
    %c12_38 = arith.constant 12 : index
    %c0_39 = arith.constant 0 : index
    %140 = vector.load %arg3[%c12_38, %c0_39] : memref<32x128xf32, #tpu.memory_space<vmem>>, vector<1x128xf32>
    %141 = vector.broadcast %139 : vector<8x1xf32> to vector<8x128xf32>
    %142 = vector.broadcast %140 : vector<1x128xf32> to vector<8x128xf32>
    %143 = arith.addf %141, %142 : vector<8x128xf32>
    %144 = math.tanh %143 : vector<8x128xf32>
    %c12_40 = arith.constant 12 : index
    %145 = memref.load %arg4[%c12_40] : memref<32xf32, #tpu.memory_space<smem>>
    %146 = vector.broadcast %145 : f32 to vector<8x128xf32>
    %147 = arith.mulf %146, %144 : vector<8x128xf32>
    %148 = arith.addf %137, %147 : vector<8x128xf32>
    %149 = arith.index_cast %4 : i32 to index
    %c13 = arith.constant 13 : index
    %150 = vector.load %arg2[%149, %c13] : memref<8x32xf32, #tpu.memory_space<vmem>>, vector<8x1xf32>
    %c13_41 = arith.constant 13 : index
    %c0_42 = arith.constant 0 : index
    %151 = vector.load %arg3[%c13_41, %c0_42] : memref<32x128xf32, #tpu.memory_space<vmem>>, vector<1x128xf32>
    %152 = vector.broadcast %150 : vector<8x1xf32> to vector<8x128xf32>
    %153 = vector.broadcast %151 : vector<1x128xf32> to vector<8x128xf32>
    %154 = arith.addf %152, %153 : vector<8x128xf32>
    %155 = math.tanh %154 : vector<8x128xf32>
    %c13_43 = arith.constant 13 : index
    %156 = memref.load %arg4[%c13_43] : memref<32xf32, #tpu.memory_space<smem>>
    %157 = vector.broadcast %156 : f32 to vector<8x128xf32>
    %158 = arith.mulf %157, %155 : vector<8x128xf32>
    %159 = arith.addf %148, %158 : vector<8x128xf32>
    %160 = arith.index_cast %4 : i32 to index
    %c14 = arith.constant 14 : index
    %161 = vector.load %arg2[%160, %c14] : memref<8x32xf32, #tpu.memory_space<vmem>>, vector<8x1xf32>
    %c14_44 = arith.constant 14 : index
    %c0_45 = arith.constant 0 : index
    %162 = vector.load %arg3[%c14_44, %c0_45] : memref<32x128xf32, #tpu.memory_space<vmem>>, vector<1x128xf32>
    %163 = vector.broadcast %161 : vector<8x1xf32> to vector<8x128xf32>
    %164 = vector.broadcast %162 : vector<1x128xf32> to vector<8x128xf32>
    %165 = arith.addf %163, %164 : vector<8x128xf32>
    %166 = math.tanh %165 : vector<8x128xf32>
    %c14_46 = arith.constant 14 : index
    %167 = memref.load %arg4[%c14_46] : memref<32xf32, #tpu.memory_space<smem>>
    %168 = vector.broadcast %167 : f32 to vector<8x128xf32>
    %169 = arith.mulf %168, %166 : vector<8x128xf32>
    %170 = arith.addf %159, %169 : vector<8x128xf32>
    %171 = arith.index_cast %4 : i32 to index
    %c15 = arith.constant 15 : index
    %172 = vector.load %arg2[%171, %c15] : memref<8x32xf32, #tpu.memory_space<vmem>>, vector<8x1xf32>
    %c15_47 = arith.constant 15 : index
    %c0_48 = arith.constant 0 : index
    %173 = vector.load %arg3[%c15_47, %c0_48] : memref<32x128xf32, #tpu.memory_space<vmem>>, vector<1x128xf32>
    %174 = vector.broadcast %172 : vector<8x1xf32> to vector<8x128xf32>
    %175 = vector.broadcast %173 : vector<1x128xf32> to vector<8x128xf32>
    %176 = arith.addf %174, %175 : vector<8x128xf32>
    %177 = math.tanh %176 : vector<8x128xf32>
    %c15_49 = arith.constant 15 : index
    %178 = memref.load %arg4[%c15_49] : memref<32xf32, #tpu.memory_space<smem>>
    %179 = vector.broadcast %178 : f32 to vector<8x128xf32>
    %180 = arith.mulf %179, %177 : vector<8x128xf32>
    %181 = arith.addf %170, %180 : vector<8x128xf32>
    %182 = arith.index_cast %4 : i32 to index
    %c16 = arith.constant 16 : index
    %183 = vector.load %arg2[%182, %c16] : memref<8x32xf32, #tpu.memory_space<vmem>>, vector<8x1xf32>
    %c16_50 = arith.constant 16 : index
    %c0_51 = arith.constant 0 : index
    %184 = vector.load %arg3[%c16_50, %c0_51] : memref<32x128xf32, #tpu.memory_space<vmem>>, vector<1x128xf32>
    %185 = vector.broadcast %183 : vector<8x1xf32> to vector<8x128xf32>
    %186 = vector.broadcast %184 : vector<1x128xf32> to vector<8x128xf32>
    %187 = arith.addf %185, %186 : vector<8x128xf32>
    %188 = math.tanh %187 : vector<8x128xf32>
    %c16_52 = arith.constant 16 : index
    %189 = memref.load %arg4[%c16_52] : memref<32xf32, #tpu.memory_space<smem>>
    %190 = vector.broadcast %189 : f32 to vector<8x128xf32>
    %191 = arith.mulf %190, %188 : vector<8x128xf32>
    %192 = arith.addf %181, %191 : vector<8x128xf32>
    %193 = arith.index_cast %4 : i32 to index
    %c17 = arith.constant 17 : index
    %194 = vector.load %arg2[%193, %c17] : memref<8x32xf32, #tpu.memory_space<vmem>>, vector<8x1xf32>
    %c17_53 = arith.constant 17 : index
    %c0_54 = arith.constant 0 : index
    %195 = vector.load %arg3[%c17_53, %c0_54] : memref<32x128xf32, #tpu.memory_space<vmem>>, vector<1x128xf32>
    %196 = vector.broadcast %194 : vector<8x1xf32> to vector<8x128xf32>
    %197 = vector.broadcast %195 : vector<1x128xf32> to vector<8x128xf32>
    %198 = arith.addf %196, %197 : vector<8x128xf32>
    %199 = math.tanh %198 : vector<8x128xf32>
    %c17_55 = arith.constant 17 : index
    %200 = memref.load %arg4[%c17_55] : memref<32xf32, #tpu.memory_space<smem>>
    %201 = vector.broadcast %200 : f32 to vector<8x128xf32>
    %202 = arith.mulf %201, %199 : vector<8x128xf32>
    %203 = arith.addf %192, %202 : vector<8x128xf32>
    %204 = arith.index_cast %4 : i32 to index
    %c18 = arith.constant 18 : index
    %205 = vector.load %arg2[%204, %c18] : memref<8x32xf32, #tpu.memory_space<vmem>>, vector<8x1xf32>
    %c18_56 = arith.constant 18 : index
    %c0_57 = arith.constant 0 : index
    %206 = vector.load %arg3[%c18_56, %c0_57] : memref<32x128xf32, #tpu.memory_space<vmem>>, vector<1x128xf32>
    %207 = vector.broadcast %205 : vector<8x1xf32> to vector<8x128xf32>
    %208 = vector.broadcast %206 : vector<1x128xf32> to vector<8x128xf32>
    %209 = arith.addf %207, %208 : vector<8x128xf32>
    %210 = math.tanh %209 : vector<8x128xf32>
    %c18_58 = arith.constant 18 : index
    %211 = memref.load %arg4[%c18_58] : memref<32xf32, #tpu.memory_space<smem>>
    %212 = vector.broadcast %211 : f32 to vector<8x128xf32>
    %213 = arith.mulf %212, %210 : vector<8x128xf32>
    %214 = arith.addf %203, %213 : vector<8x128xf32>
    %215 = arith.index_cast %4 : i32 to index
    %c19 = arith.constant 19 : index
    %216 = vector.load %arg2[%215, %c19] : memref<8x32xf32, #tpu.memory_space<vmem>>, vector<8x1xf32>
    %c19_59 = arith.constant 19 : index
    %c0_60 = arith.constant 0 : index
    %217 = vector.load %arg3[%c19_59, %c0_60] : memref<32x128xf32, #tpu.memory_space<vmem>>, vector<1x128xf32>
    %218 = vector.broadcast %216 : vector<8x1xf32> to vector<8x128xf32>
    %219 = vector.broadcast %217 : vector<1x128xf32> to vector<8x128xf32>
    %220 = arith.addf %218, %219 : vector<8x128xf32>
    %221 = math.tanh %220 : vector<8x128xf32>
    %c19_61 = arith.constant 19 : index
    %222 = memref.load %arg4[%c19_61] : memref<32xf32, #tpu.memory_space<smem>>
    %223 = vector.broadcast %222 : f32 to vector<8x128xf32>
    %224 = arith.mulf %223, %221 : vector<8x128xf32>
    %225 = arith.addf %214, %224 : vector<8x128xf32>
    %226 = arith.index_cast %4 : i32 to index
    %c20 = arith.constant 20 : index
    %227 = vector.load %arg2[%226, %c20] : memref<8x32xf32, #tpu.memory_space<vmem>>, vector<8x1xf32>
    %c20_62 = arith.constant 20 : index
    %c0_63 = arith.constant 0 : index
    %228 = vector.load %arg3[%c20_62, %c0_63] : memref<32x128xf32, #tpu.memory_space<vmem>>, vector<1x128xf32>
    %229 = vector.broadcast %227 : vector<8x1xf32> to vector<8x128xf32>
    %230 = vector.broadcast %228 : vector<1x128xf32> to vector<8x128xf32>
    %231 = arith.addf %229, %230 : vector<8x128xf32>
    %232 = math.tanh %231 : vector<8x128xf32>
    %c20_64 = arith.constant 20 : index
    %233 = memref.load %arg4[%c20_64] : memref<32xf32, #tpu.memory_space<smem>>
    %234 = vector.broadcast %233 : f32 to vector<8x128xf32>
    %235 = arith.mulf %234, %232 : vector<8x128xf32>
    %236 = arith.addf %225, %235 : vector<8x128xf32>
    %237 = arith.index_cast %4 : i32 to index
    %c21 = arith.constant 21 : index
    %238 = vector.load %arg2[%237, %c21] : memref<8x32xf32, #tpu.memory_space<vmem>>, vector<8x1xf32>
    %c21_65 = arith.constant 21 : index
    %c0_66 = arith.constant 0 : index
    %239 = vector.load %arg3[%c21_65, %c0_66] : memref<32x128xf32, #tpu.memory_space<vmem>>, vector<1x128xf32>
    %240 = vector.broadcast %238 : vector<8x1xf32> to vector<8x128xf32>
    %241 = vector.broadcast %239 : vector<1x128xf32> to vector<8x128xf32>
    %242 = arith.addf %240, %241 : vector<8x128xf32>
    %243 = math.tanh %242 : vector<8x128xf32>
    %c21_67 = arith.constant 21 : index
    %244 = memref.load %arg4[%c21_67] : memref<32xf32, #tpu.memory_space<smem>>
    %245 = vector.broadcast %244 : f32 to vector<8x128xf32>
    %246 = arith.mulf %245, %243 : vector<8x128xf32>
    %247 = arith.addf %236, %246 : vector<8x128xf32>
    %248 = arith.index_cast %4 : i32 to index
    %c22 = arith.constant 22 : index
    %249 = vector.load %arg2[%248, %c22] : memref<8x32xf32, #tpu.memory_space<vmem>>, vector<8x1xf32>
    %c22_68 = arith.constant 22 : index
    %c0_69 = arith.constant 0 : index
    %250 = vector.load %arg3[%c22_68, %c0_69] : memref<32x128xf32, #tpu.memory_space<vmem>>, vector<1x128xf32>
    %251 = vector.broadcast %249 : vector<8x1xf32> to vector<8x128xf32>
    %252 = vector.broadcast %250 : vector<1x128xf32> to vector<8x128xf32>
    %253 = arith.addf %251, %252 : vector<8x128xf32>
    %254 = math.tanh %253 : vector<8x128xf32>
    %c22_70 = arith.constant 22 : index
    %255 = memref.load %arg4[%c22_70] : memref<32xf32, #tpu.memory_space<smem>>
    %256 = vector.broadcast %255 : f32 to vector<8x128xf32>
    %257 = arith.mulf %256, %254 : vector<8x128xf32>
    %258 = arith.addf %247, %257 : vector<8x128xf32>
    %259 = arith.index_cast %4 : i32 to index
    %c23 = arith.constant 23 : index
    %260 = vector.load %arg2[%259, %c23] : memref<8x32xf32, #tpu.memory_space<vmem>>, vector<8x1xf32>
    %c23_71 = arith.constant 23 : index
    %c0_72 = arith.constant 0 : index
    %261 = vector.load %arg3[%c23_71, %c0_72] : memref<32x128xf32, #tpu.memory_space<vmem>>, vector<1x128xf32>
    %262 = vector.broadcast %260 : vector<8x1xf32> to vector<8x128xf32>
    %263 = vector.broadcast %261 : vector<1x128xf32> to vector<8x128xf32>
    %264 = arith.addf %262, %263 : vector<8x128xf32>
    %265 = math.tanh %264 : vector<8x128xf32>
    %c23_73 = arith.constant 23 : index
    %266 = memref.load %arg4[%c23_73] : memref<32xf32, #tpu.memory_space<smem>>
    %267 = vector.broadcast %266 : f32 to vector<8x128xf32>
    %268 = arith.mulf %267, %265 : vector<8x128xf32>
    %269 = arith.addf %258, %268 : vector<8x128xf32>
    %270 = arith.index_cast %4 : i32 to index
    %c24 = arith.constant 24 : index
    %271 = vector.load %arg2[%270, %c24] : memref<8x32xf32, #tpu.memory_space<vmem>>, vector<8x1xf32>
    %c24_74 = arith.constant 24 : index
    %c0_75 = arith.constant 0 : index
    %272 = vector.load %arg3[%c24_74, %c0_75] : memref<32x128xf32, #tpu.memory_space<vmem>>, vector<1x128xf32>
    %273 = vector.broadcast %271 : vector<8x1xf32> to vector<8x128xf32>
    %274 = vector.broadcast %272 : vector<1x128xf32> to vector<8x128xf32>
    %275 = arith.addf %273, %274 : vector<8x128xf32>
    %276 = math.tanh %275 : vector<8x128xf32>
    %c24_76 = arith.constant 24 : index
    %277 = memref.load %arg4[%c24_76] : memref<32xf32, #tpu.memory_space<smem>>
    %278 = vector.broadcast %277 : f32 to vector<8x128xf32>
    %279 = arith.mulf %278, %276 : vector<8x128xf32>
    %280 = arith.addf %269, %279 : vector<8x128xf32>
    %281 = arith.index_cast %4 : i32 to index
    %c25 = arith.constant 25 : index
    %282 = vector.load %arg2[%281, %c25] : memref<8x32xf32, #tpu.memory_space<vmem>>, vector<8x1xf32>
    %c25_77 = arith.constant 25 : index
    %c0_78 = arith.constant 0 : index
    %283 = vector.load %arg3[%c25_77, %c0_78] : memref<32x128xf32, #tpu.memory_space<vmem>>, vector<1x128xf32>
    %284 = vector.broadcast %282 : vector<8x1xf32> to vector<8x128xf32>
    %285 = vector.broadcast %283 : vector<1x128xf32> to vector<8x128xf32>
    %286 = arith.addf %284, %285 : vector<8x128xf32>
    %287 = math.tanh %286 : vector<8x128xf32>
    %c25_79 = arith.constant 25 : index
    %288 = memref.load %arg4[%c25_79] : memref<32xf32, #tpu.memory_space<smem>>
    %289 = vector.broadcast %288 : f32 to vector<8x128xf32>
    %290 = arith.mulf %289, %287 : vector<8x128xf32>
    %291 = arith.addf %280, %290 : vector<8x128xf32>
    %292 = arith.index_cast %4 : i32 to index
    %c26 = arith.constant 26 : index
    %293 = vector.load %arg2[%292, %c26] : memref<8x32xf32, #tpu.memory_space<vmem>>, vector<8x1xf32>
    %c26_80 = arith.constant 26 : index
    %c0_81 = arith.constant 0 : index
    %294 = vector.load %arg3[%c26_80, %c0_81] : memref<32x128xf32, #tpu.memory_space<vmem>>, vector<1x128xf32>
    %295 = vector.broadcast %293 : vector<8x1xf32> to vector<8x128xf32>
    %296 = vector.broadcast %294 : vector<1x128xf32> to vector<8x128xf32>
    %297 = arith.addf %295, %296 : vector<8x128xf32>
    %298 = math.tanh %297 : vector<8x128xf32>
    %c26_82 = arith.constant 26 : index
    %299 = memref.load %arg4[%c26_82] : memref<32xf32, #tpu.memory_space<smem>>
    %300 = vector.broadcast %299 : f32 to vector<8x128xf32>
    %301 = arith.mulf %300, %298 : vector<8x128xf32>
    %302 = arith.addf %291, %301 : vector<8x128xf32>
    %303 = arith.index_cast %4 : i32 to index
    %c27 = arith.constant 27 : index
    %304 = vector.load %arg2[%303, %c27] : memref<8x32xf32, #tpu.memory_space<vmem>>, vector<8x1xf32>
    %c27_83 = arith.constant 27 : index
    %c0_84 = arith.constant 0 : index
    %305 = vector.load %arg3[%c27_83, %c0_84] : memref<32x128xf32, #tpu.memory_space<vmem>>, vector<1x128xf32>
    %306 = vector.broadcast %304 : vector<8x1xf32> to vector<8x128xf32>
    %307 = vector.broadcast %305 : vector<1x128xf32> to vector<8x128xf32>
    %308 = arith.addf %306, %307 : vector<8x128xf32>
    %309 = math.tanh %308 : vector<8x128xf32>
    %c27_85 = arith.constant 27 : index
    %310 = memref.load %arg4[%c27_85] : memref<32xf32, #tpu.memory_space<smem>>
    %311 = vector.broadcast %310 : f32 to vector<8x128xf32>
    %312 = arith.mulf %311, %309 : vector<8x128xf32>
    %313 = arith.addf %302, %312 : vector<8x128xf32>
    %314 = arith.index_cast %4 : i32 to index
    %c28 = arith.constant 28 : index
    %315 = vector.load %arg2[%314, %c28] : memref<8x32xf32, #tpu.memory_space<vmem>>, vector<8x1xf32>
    %c28_86 = arith.constant 28 : index
    %c0_87 = arith.constant 0 : index
    %316 = vector.load %arg3[%c28_86, %c0_87] : memref<32x128xf32, #tpu.memory_space<vmem>>, vector<1x128xf32>
    %317 = vector.broadcast %315 : vector<8x1xf32> to vector<8x128xf32>
    %318 = vector.broadcast %316 : vector<1x128xf32> to vector<8x128xf32>
    %319 = arith.addf %317, %318 : vector<8x128xf32>
    %320 = math.tanh %319 : vector<8x128xf32>
    %c28_88 = arith.constant 28 : index
    %321 = memref.load %arg4[%c28_88] : memref<32xf32, #tpu.memory_space<smem>>
    %322 = vector.broadcast %321 : f32 to vector<8x128xf32>
    %323 = arith.mulf %322, %320 : vector<8x128xf32>
    %324 = arith.addf %313, %323 : vector<8x128xf32>
    %325 = arith.index_cast %4 : i32 to index
    %c29 = arith.constant 29 : index
    %326 = vector.load %arg2[%325, %c29] : memref<8x32xf32, #tpu.memory_space<vmem>>, vector<8x1xf32>
    %c29_89 = arith.constant 29 : index
    %c0_90 = arith.constant 0 : index
    %327 = vector.load %arg3[%c29_89, %c0_90] : memref<32x128xf32, #tpu.memory_space<vmem>>, vector<1x128xf32>
    %328 = vector.broadcast %326 : vector<8x1xf32> to vector<8x128xf32>
    %329 = vector.broadcast %327 : vector<1x128xf32> to vector<8x128xf32>
    %330 = arith.addf %328, %329 : vector<8x128xf32>
    %331 = math.tanh %330 : vector<8x128xf32>
    %c29_91 = arith.constant 29 : index
    %332 = memref.load %arg4[%c29_91] : memref<32xf32, #tpu.memory_space<smem>>
    %333 = vector.broadcast %332 : f32 to vector<8x128xf32>
    %334 = arith.mulf %333, %331 : vector<8x128xf32>
    %335 = arith.addf %324, %334 : vector<8x128xf32>
    %336 = arith.index_cast %4 : i32 to index
    %c30 = arith.constant 30 : index
    %337 = vector.load %arg2[%336, %c30] : memref<8x32xf32, #tpu.memory_space<vmem>>, vector<8x1xf32>
    %c30_92 = arith.constant 30 : index
    %c0_93 = arith.constant 0 : index
    %338 = vector.load %arg3[%c30_92, %c0_93] : memref<32x128xf32, #tpu.memory_space<vmem>>, vector<1x128xf32>
    %339 = vector.broadcast %337 : vector<8x1xf32> to vector<8x128xf32>
    %340 = vector.broadcast %338 : vector<1x128xf32> to vector<8x128xf32>
    %341 = arith.addf %339, %340 : vector<8x128xf32>
    %342 = math.tanh %341 : vector<8x128xf32>
    %c30_94 = arith.constant 30 : index
    %343 = memref.load %arg4[%c30_94] : memref<32xf32, #tpu.memory_space<smem>>
    %344 = vector.broadcast %343 : f32 to vector<8x128xf32>
    %345 = arith.mulf %344, %342 : vector<8x128xf32>
    %346 = arith.addf %335, %345 : vector<8x128xf32>
    %347 = arith.index_cast %4 : i32 to index
    %c31 = arith.constant 31 : index
    %348 = vector.load %arg2[%347, %c31] : memref<8x32xf32, #tpu.memory_space<vmem>>, vector<8x1xf32>
    %c31_95 = arith.constant 31 : index
    %c0_96 = arith.constant 0 : index
    %349 = vector.load %arg3[%c31_95, %c0_96] : memref<32x128xf32, #tpu.memory_space<vmem>>, vector<1x128xf32>
    %350 = vector.broadcast %348 : vector<8x1xf32> to vector<8x128xf32>
    %351 = vector.broadcast %349 : vector<1x128xf32> to vector<8x128xf32>
    %352 = arith.addf %350, %351 : vector<8x128xf32>
    %353 = math.tanh %352 : vector<8x128xf32>
    %c31_97 = arith.constant 31 : index
    %354 = memref.load %arg4[%c31_97] : memref<32xf32, #tpu.memory_space<smem>>
    %355 = vector.broadcast %354 : f32 to vector<8x128xf32>
    %356 = arith.mulf %355, %353 : vector<8x128xf32>
    %357 = arith.addf %346, %356 : vector<8x128xf32>
    %358 = arith.index_cast %4 : i32 to index
    %c0_98 = arith.constant 0 : index
    %359 = vector.load %arg6[%358, %c0_98] : memref<8x128xf32, #tpu.memory_space<vmem>>, vector<8x128xf32>
    tpu.vector_store %arg6[%358, %c0_98], %357 {strides = array<i32>} : memref<8x128xf32, #tpu.memory_space<vmem>>, vector<8x128xf32>,
    %c1_i32_99 = arith.constant 1 : i32
    return
  }
  func.func @transform_0(%arg0: i32, %arg1: i32) -> (i32, i32) {
    %c0_i32 = arith.constant 0 : i32
    %c0_i32_0 = arith.constant 0 : i32
    return %arg0, %c0_i32 : i32, i32
  }
  func.func @transform_1(%arg0: i32, %arg1: i32) -> (i32, i32) {
    %c0_i32 = arith.constant 0 : i32
    %c0_i32_0 = arith.constant 0 : i32
    return %c0_i32, %arg1 : i32, i32
  }
  func.func @transform_2(%arg0: i32, %arg1: i32) -> i32 {
    %c0_i32 = arith.constant 0 : i32
    %c0_i32_0 = arith.constant 0 : i32
    return %c0_i32 : i32
  }
  func.func @transform_3(%arg0: i32, %arg1: i32) -> i32 {
    %c0_i32 = arith.constant 0 : i32
    %c0_i32_0 = arith.constant 0 : i32
    return %c0_i32 : i32
  }
  func.func @transform_4(%arg0: i32, %arg1: i32) -> (i32, i32) {
    %c0_i32 = arith.constant 0 : i32
    return %arg0, %arg1 : i32, i32
  }
}

</mosaic_0001>

<llo_original>
// kernel: tpu_custom_call.1
$region0: #{tpu_custom_call.1}
  #allocation0 [shape = 'u32[]', space=smem, size = 0x4, offset = 0x4, fixed_abs, tag = 'smem constant byte address 0x4 - core index']
  #allocation1 [shape = 'u32[144,128]{1,0:T(1,128)}', space=vmem, size = 0x12000, scoped, tag = 'internal scratch']
  #allocation2 [shape = 'f32[1]{0:T(128)S(6)}', space=smem, size = 0x200, scoped, tag = 'scoped memory for tpu_custom_call.1']
  %s0 = inlined_call_operand.hbm [shape: f32[8,32], index: 0, kind: input, shape index: {}]
  %s1 = inlined_call_operand.hbm [shape: f32[32,128], index: 1, kind: input, shape index: {}]
  %s2 = inlined_call_operand.vmem [shape: f32[32], index: 2, kind: input, shape index: {}]
  %s3 = inlined_call_operand.<no memory space> [shape: f32[1], index: 3, kind: input, shape index: {}]
  %s4 = inlined_call_operand.hbm [shape: f32[8,128], index: 4, kind: output, shape index: {}]
  %s5 = sld [smem:[#allocation0]]
  $region38: #{tpu_custom_call.1} parent=0
    _
  %s7 = ssub.s32 1, %s5
  %s8 = scalar_select 0, %s7, %s5
  %9 = sst [smem:[#allocation2]] %s3
  $region1: #{tpu_custom_call.1} parent=0
    #allocation3 [shape = 'u8[4096]{0}', space=vmem, size = 0x1000, scoped, tag = 'input window, operand 0, single buffered']
    #allocation4 [shape = 's32[1]{0}', space=sflag, size = 0x4, scoped, tag = 'scoped memory for tpu_custom_call.1']
    #allocation5 [shape = 's32[1]{0}', space=sflag, size = 0x4, scoped, tag = 'scoped memory for tpu_custom_call.1']
    #allocation6 [shape = 's32[1]{0}', space=sflag, size = 0x4, scoped, tag = 'scoped memory for tpu_custom_call.1']
    #allocation7 [shape = 'u8[16384]{0}', space=vmem, size = 0x4000, scoped, tag = 'input window, operand 1, single buffered']
    #allocation8 [shape = 's32[1]{0}', space=sflag, size = 0x4, scoped, tag = 'scoped memory for tpu_custom_call.1']
    #allocation9 [shape = 'u8[512]{0}', space=smem, size = 0x200, scoped, tag = 'input window, operand 2, single buffered']
    #allocation10 [shape = 'u8[4096]{0}', space=vmem, size = 0x1000, scoped, tag = 'output window, operand 0, single buffered']
    %10 = vsyncpa [#allocation4], 0
    %11 = vsyncpa [#allocation8], 0
    %12 = vsyncpa [#allocation6], 0
    %13 = vsyncpa [#allocation5], 0
    // Predicated region
    $region2: #{tpu_custom_call.1} parent=1 // pred_check
      _
    $region3: #{tpu_custom_call.1} parent=1 // pred_check_branch
      %15 = sbr.rel (0) target = $region5
    $region4: #{tpu_custom_call.1} parent=1 // pred_region
      %s17 = ssub.s32 128, 128
      %18 = vsyncadd [#allocation4], %s17
      %s20 = sshll.u32 [#allocation3], 4
      %s21 = int_to_ptr.vmem [resolvable:$true] %s20
      %23 = dma.hbm_to_vmem [thread:$0]  %s0, 128, %s21, [#allocation4]
    $region5: #{tpu_custom_call.1} parent=1 // pred_fallthru
      _
    // Predicated region
    $region6: #{tpu_custom_call.1} parent=1 // pred_check
      _
    $region7: #{tpu_custom_call.1} parent=1 // pred_check_branch
      %25 = sbr.rel (0) target = $region9
    $region8: #{tpu_custom_call.1} parent=1 // pred_region
      %s27 = ssub.s32 512, 512
      %28 = vsyncadd [#allocation8], %s27
      %s29 = sshll.u32 [#allocation7], 4
      %s30 = int_to_ptr.vmem [resolvable:$true] %s29
      %35 = dma.hbm_to_vmem [thread:$0]  %s1, 512, %s30, [#allocation8], 128, 128, 8
    $region9: #{tpu_custom_call.1} parent=1 // pred_fallthru
      _
    // Predicated region
    $region10: #{tpu_custom_call.1} parent=1 // pred_check
      _
    $region11: #{tpu_custom_call.1} parent=1 // pred_check_branch
      %37 = sbr.rel (0) target = $region13
    $region12: #{tpu_custom_call.1} parent=1 // pred_region
      %s39 = ssub.s32 16, 16
      %40 = vsyncadd [#allocation6], %s39
      %s42 = sshll.u32 %s2, 4
      %s43 = int_to_ptr.vmem [resolvable:$true] %s42
      %45 = dma.vmem_to_smem %s43, 16, [#allocation9], [#allocation6]
    $region13: #{tpu_custom_call.1} parent=1 // pred_fallthru
      _
    // Predicated region
    $region14: #{tpu_custom_call.1} parent=1 // pred_check
      _
    $region15: #{tpu_custom_call.1} parent=1 // pred_check_branch
      %47 = sbr.rel (0) target = $region17
    $region16: #{tpu_custom_call.1} parent=1 // pred_region
      _
    $region17: #{tpu_custom_call.1} parent=1 // pred_fallthru
      _
    // Predicated region
    $region18: #{tpu_custom_call.1} parent=1 // pred_check
      _
    $region19: #{tpu_custom_call.1} parent=1 // pred_check_branch
      %49 = sbr.rel (0) target = $region21
    $region20: #{tpu_custom_call.1} parent=1 // pred_region
      %50 = dma.done [#allocation4], 128
    $region21: #{tpu_custom_call.1} parent=1 // pred_fallthru
      _
    // Predicated region
    $region22: #{tpu_custom_call.1} parent=1 // pred_check
      _
    $region23: #{tpu_custom_call.1} parent=1 // pred_check_branch
      %52 = sbr.rel (0) target = $region25
    $region24: #{tpu_custom_call.1} parent=1 // pred_region
      %53 = dma.done [#allocation8], 512
    $region25: #{tpu_custom_call.1} parent=1 // pred_fallthru
      _
    // Predicated region
    $region26: #{tpu_custom_call.1} parent=1 // pred_check
      _
    $region27: #{tpu_custom_call.1} parent=1 // pred_check_branch
      %55 = sbr.rel (0) target = $region29
    $region28: #{tpu_custom_call.1} parent=1 // pred_region
      %56 = dma.done [#allocation6], 16
    $region29: #{tpu_custom_call.1} parent=1 // pred_fallthru
      _
    %57 = sfence
    %s58 = sld [smem:[#allocation2]]
    %v59 = vstv %s58
    %v60 = vld [vmem:[#allocation3] sm:$0xff]
    %v61 = vld [vmem:[#allocation7] sm:$0x1]
    %63 = vset.pattern.permute.xlu0 0
    %64 = vperm.xlu0 %63, %v60
    %v65 = vpop.permute.xlu0 %64
    %v67 = vlaneseq
    %v68 = vshrl.u32 %v67, 7
    %v69 = vsub.s32 0, %v68
    %v70 = vrot.slane %v61, %v69
    %v71 = vadd.f32 %v65, %v70
    %v72 = vtanh.pop %v71
    %s73 = sld [smem:[#allocation9]]
    %v74 = vstv %s73
    %v75 = vmul.f32 %v74, %v72
    %v76 = vadd.f32 %v59, %v75
    %v77 = vld [vmem:[#allocation7 + $0x1] sm:$0x1]
    %78 = vset.pattern.permute.xlu0 1
    %79 = vperm.xlu0 %78, %v60
    %v80 = vpop.permute.xlu0 %79
    %v82 = vlaneseq
    %v83 = vshrl.u32 %v82, 7
    %v84 = vsub.s32 0, %v83
    %v85 = vrot.slane %v77, %v84
    %v86 = vadd.f32 %v80, %v85
    %v87 = vtanh.pop %v86
    %s88 = sld [smem:[#allocation9 + $0x1]]
    %v89 = vstv %s88
    %v90 = vmul.f32 %v89, %v87
    %v91 = vadd.f32 %v76, %v90
    %v92 = vld [vmem:[#allocation7 + $0x2] sm:$0x1]
    %93 = vset.pattern.permute.xlu0 2
    %94 = vperm.xlu0 %93, %v60
    %v95 = vpop.permute.xlu0 %94
    %v97 = vlaneseq
    %v98 = vshrl.u32 %v97, 7
    %v99 = vsub.s32 0, %v98
    %v100 = vrot.slane %v92, %v99
    %v101 = vadd.f32 %v95, %v100
    %v102 = vtanh.pop %v101
    %s103 = sld [smem:[#allocation9 + $0x2]]
    %v104 = vstv %s103
    %v105 = vmul.f32 %v104, %v102
    %v106 = vadd.f32 %v91, %v105
    %v107 = vld [vmem:[#allocation7 + $0x3] sm:$0x1]
    %108 = vset.pattern.permute.xlu0 3
    %109 = vperm.xlu0 %108, %v60
    %v110 = vpop.permute.xlu0 %109
    %v112 = vlaneseq
    %v113 = vshrl.u32 %v112, 7
    %v114 = vsub.s32 0, %v113
    %v115 = vrot.slane %v107, %v114
    %v116 = vadd.f32 %v110, %v115
    %v117 = vtanh.pop %v116
    %s118 = sld [smem:[#allocation9 + $0x3]]
    %v119 = vstv %s118
    %v120 = vmul.f32 %v119, %v117
    %v121 = vadd.f32 %v106, %v120
    %v122 = vld [vmem:[#allocation7 + $0x4] sm:$0x1]
    %123 = vset.pattern.permute.xlu0 4
    %124 = vperm.xlu0 %123, %v60
    %v125 = vpop.permute.xlu0 %124
    %v127 = vlaneseq
    %v128 = vshrl.u32 %v127, 7
    %v129 = vsub.s32 0, %v128
    %v130 = vrot.slane %v122, %v129
    %v131 = vadd.f32 %v125, %v130
    %v132 = vtanh.pop %v131
    %s133 = sld [smem:[#allocation9 + $0x4]]
    %v134 = vstv %s133
    %v135 = vmul.f32 %v134, %v132
    %v136 = vadd.f32 %v121, %v135
    %v137 = vld [vmem:[#allocation7 + $0x5] sm:$0x1]
    %138 = vset.pattern.permute.xlu0 5
    %139 = vperm.xlu0 %138, %v60
    %v140 = vpop.permute.xlu0 %139
    %v142 = vlaneseq
    %v143 = vshrl.u32 %v142, 7
    %v144 = vsub.s32 0, %v143
    %v145 = vrot.slane %v137, %v144
    %v146 = vadd.f32 %v140, %v145
    %v147 = vtanh.pop %v146
    %s148 = sld [smem:[#allocation9 + $0x5]]
    %v149 = vstv %s148
    %v150 = vmul.f32 %v149, %v147
    %v151 = vadd.f32 %v136, %v150
    %v152 = vld [vmem:[#allocation7 + $0x6] sm:$0x1]
    %153 = vset.pattern.permute.xlu0 6
    %154 = vperm.xlu0 %153, %v60
    %v155 = vpop.permute.xlu0 %154
    %v157 = vlaneseq
    %v158 = vshrl.u32 %v157, 7
    %v159 = vsub.s32 0, %v158
    %v160 = vrot.slane %v152, %v159
    %v161 = vadd.f32 %v155, %v160
    %v162 = vtanh.pop %v161
    %s163 = sld [smem:[#allocation9 + $0x6]]
    %v164 = vstv %s163
    %v165 = vmul.f32 %v164, %v162
    %v166 = vadd.f32 %v151, %v165
    %v167 = vld [vmem:[#allocation7 + $0x7] sm:$0x1]
    %168 = vset.pattern.permute.xlu0 7
    %169 = vperm.xlu0 %168, %v60
    %v170 = vpop.permute.xlu0 %169
    %v172 = vlaneseq
    %v173 = vshrl.u32 %v172, 7
    %v174 = vsub.s32 0, %v173
    %v175 = vrot.slane %v167, %v174
    %v176 = vadd.f32 %v170, %v175
    %v177 = vtanh.pop %v176
    %s178 = sld [smem:[#allocation9 + $0x7]]
    %v179 = vstv %s178
    %v180 = vmul.f32 %v179, %v177
    %v181 = vadd.f32 %v166, %v180
    %v182 = vld [vmem:[#allocation7 + $0x8] sm:$0x1]
    %183 = vset.pattern.permute.xlu0 8
    %184 = vperm.xlu0 %183, %v60
    %v185 = vpop.permute.xlu0 %184
    %v187 = vlaneseq
    %v188 = vshrl.u32 %v187, 7
    %v189 = vsub.s32 0, %v188
    %v190 = vrot.slane %v182, %v189
    %v191 = vadd.f32 %v185, %v190
    %v192 = vtanh.pop %v191
    %s193 = sld [smem:[#allocation9 + $0x8]]
    %v194 = vstv %s193
    %v195 = vmul.f32 %v194, %v192
    %v196 = vadd.f32 %v181, %v195
    %v197 = vld [vmem:[#allocation7 + $0x9] sm:$0x1]
    %198 = vset.pattern.permute.xlu0 9
    %199 = vperm.xlu0 %198, %v60
    %v200 = vpop.permute.xlu0 %199
    %v202 = vlaneseq
    %v203 = vshrl.u32 %v202, 7
    %v204 = vsub.s32 0, %v203
    %v205 = vrot.slane %v197, %v204
    %v206 = vadd.f32 %v200, %v205
    %v207 = vtanh.pop %v206
    %s208 = sld [smem:[#allocation9 + $0x9]]
    %v209 = vstv %s208
    %v210 = vmul.f32 %v209, %v207
    %v211 = vadd.f32 %v196, %v210
    %v212 = vld [vmem:[#allocation7 + $0xa] sm:$0x1]
    %213 = vset.pattern.permute.xlu0 10
    %214 = vperm.xlu0 %213, %v60
    %v215 = vpop.permute.xlu0 %214
    %v217 = vlaneseq
    %v218 = vshrl.u32 %v217, 7
    %v219 = vsub.s32 0, %v218
    %v220 = vrot.slane %v212, %v219
    %v221 = vadd.f32 %v215, %v220
    %v222 = vtanh.pop %v221
    %s223 = sld [smem:[#allocation9 + $0xa]]
    %v224 = vstv %s223
    %v225 = vmul.f32 %v224, %v222
    %v226 = vadd.f32 %v211, %v225
    %v227 = vld [vmem:[#allocation7 + $0xb] sm:$0x1]
    %228 = vset.pattern.permute.xlu0 11
    %229 = vperm.xlu0 %228, %v60
    %v230 = vpop.permute.xlu0 %229
    %v232 = vlaneseq
    %v233 = vshrl.u32 %v232, 7
    %v234 = vsub.s32 0, %v233
    %v235 = vrot.slane %v227, %v234
    %v236 = vadd.f32 %v230, %v235
    %v237 = vtanh.pop %v236
    %s238 = sld [smem:[#allocation9 + $0xb]]
    %v239 = vstv %s238
    %v240 = vmul.f32 %v239, %v237
    %v241 = vadd.f32 %v226, %v240
    %v242 = vld [vmem:[#allocation7 + $0xc] sm:$0x1]
    %243 = vset.pattern.permute.xlu0 12
    %244 = vperm.xlu0 %243, %v60
    %v245 = vpop.permute.xlu0 %244
    %v247 = vlaneseq
    %v248 = vshrl.u32 %v247, 7
    %v249 = vsub.s32 0, %v248
    %v250 = vrot.slane %v242, %v249
    %v251 = vadd.f32 %v245, %v250
    %v252 = vtanh.pop %v251
    %s253 = sld [smem:[#allocation9 + $0xc]]
    %v254 = vstv %s253
    %v255 = vmul.f32 %v254, %v252
    %v256 = vadd.f32 %v241, %v255
    %v257 = vld [vmem:[#allocation7 + $0xd] sm:$0x1]
    %258 = vset.pattern.permute.xlu0 13
    %259 = vperm.xlu0 %258, %v60
    %v260 = vpop.permute.xlu0 %259
    %v262 = vlaneseq
    %v263 = vshrl.u32 %v262, 7
    %v264 = vsub.s32 0, %v263
    %v265 = vrot.slane %v257, %v264
    %v266 = vadd.f32 %v260, %v265
    %v267 = vtanh.pop %v266
    %s268 = sld [smem:[#allocation9 + $0xd]]
    %v269 = vstv %s268
    %v270 = vmul.f32 %v269, %v267
    %v271 = vadd.f32 %v256, %v270
    %v272 = vld [vmem:[#allocation7 + $0xe] sm:$0x1]
    %273 = vset.pattern.permute.xlu0 14
    %274 = vperm.xlu0 %273, %v60
    %v275 = vpop.permute.xlu0 %274
    %v277 = vlaneseq
    %v278 = vshrl.u32 %v277, 7
    %v279 = vsub.s32 0, %v278
    %v280 = vrot.slane %v272, %v279
    %v281 = vadd.f32 %v275, %v280
    %v282 = vtanh.pop %v281
    %s283 = sld [smem:[#allocation9 + $0xe]]
    %v284 = vstv %s283
    %v285 = vmul.f32 %v284, %v282
    %v286 = vadd.f32 %v271, %v285
    %v287 = vld [vmem:[#allocation7 + $0xf] sm:$0x1]
    %288 = vset.pattern.permute.xlu0 15
    %289 = vperm.xlu0 %288, %v60
    %v290 = vpop.permute.xlu0 %289
    %v292 = vlaneseq
    %v293 = vshrl.u32 %v292, 7
    %v294 = vsub.s32 0, %v293
    %v295 = vrot.slane %v287, %v294
    %v296 = vadd.f32 %v290, %v295
    %v297 = vtanh.pop %v296
    %s298 = sld [smem:[#allocation9 + $0xf]]
    %v299 = vstv %s298
    %v300 = vmul.f32 %v299, %v297
    %v301 = vadd.f32 %v286, %v300
    %v302 = vld [vmem:[#allocation7 + $0x10] sm:$0x1]
    %303 = vset.pattern.permute.xlu0 16
    %304 = vperm.xlu0 %303, %v60
    %v305 = vpop.permute.xlu0 %304
    %v307 = vlaneseq
    %v308 = vshrl.u32 %v307, 7
    %v309 = vsub.s32 0, %v308
    %v310 = vrot.slane %v302, %v309
    %v311 = vadd.f32 %v305, %v310
    %v312 = vtanh.pop %v311
    %s313 = sld [smem:[#allocation9 + $0x10]]
    %v314 = vstv %s313
    %v315 = vmul.f32 %v314, %v312
    %v316 = vadd.f32 %v301, %v315
    %v317 = vld [vmem:[#allocation7 + $0x11] sm:$0x1]
    %318 = vset.pattern.permute.xlu0 17
    %319 = vperm.xlu0 %318, %v60
    %v320 = vpop.permute.xlu0 %319
    %v322 = vlaneseq
    %v323 = vshrl.u32 %v322, 7
    %v324 = vsub.s32 0, %v323
    %v325 = vrot.slane %v317, %v324
    %v326 = vadd.f32 %v320, %v325
    %v327 = vtanh.pop %v326
    %s328 = sld [smem:[#allocation9 + $0x11]]
    %v329 = vstv %s328
    %v330 = vmul.f32 %v329, %v327
    %v331 = vadd.f32 %v316, %v330
    %v332 = vld [vmem:[#allocation7 + $0x12] sm:$0x1]
    %333 = vset.pattern.permute.xlu0 18
    %334 = vperm.xlu0 %333, %v60
    %v335 = vpop.permute.xlu0 %334
    %v337 = vlaneseq
    %v338 = vshrl.u32 %v337, 7
    %v339 = vsub.s32 0, %v338
    %v340 = vrot.slane %v332, %v339
    %v341 = vadd.f32 %v335, %v340
    %v342 = vtanh.pop %v341
    %s343 = sld [smem:[#allocation9 + $0x12]]
    %v344 = vstv %s343
    %v345 = vmul.f32 %v344, %v342
    %v346 = vadd.f32 %v331, %v345
    %v347 = vld [vmem:[#allocation7 + $0x13] sm:$0x1]
    %348 = vset.pattern.permute.xlu0 19
    %349 = vperm.xlu0 %348, %v60
    %v350 = vpop.permute.xlu0 %349
    %v352 = vlaneseq
    %v353 = vshrl.u32 %v352, 7
    %v354 = vsub.s32 0, %v353
    %v355 = vrot.slane %v347, %v354
    %v356 = vadd.f32 %v350, %v355
    %v357 = vtanh.pop %v356
    %s358 = sld [smem:[#allocation9 + $0x13]]
    %v359 = vstv %s358
    %v360 = vmul.f32 %v359, %v357
    %v361 = vadd.f32 %v346, %v360
    %v362 = vld [vmem:[#allocation7 + $0x14] sm:$0x1]
    %363 = vset.pattern.permute.xlu0 20
    %364 = vperm.xlu0 %363, %v60
    %v365 = vpop.permute.xlu0 %364
    %v367 = vlaneseq
    %v368 = vshrl.u32 %v367, 7
    %v369 = vsub.s32 0, %v368
    %v370 = vrot.slane %v362, %v369
    %v371 = vadd.f32 %v365, %v370
    %v372 = vtanh.pop %v371
    %s373 = sld [smem:[#allocation9 + $0x14]]
    %v374 = vstv %s373
    %v375 = vmul.f32 %v374, %v372
    %v376 = vadd.f32 %v361, %v375
    %v377 = vld [vmem:[#allocation7 + $0x15] sm:$0x1]
    %378 = vset.pattern.permute.xlu0 21
    %379 = vperm.xlu0 %378, %v60
    %v380 = vpop.permute.xlu0 %379
    %v382 = vlaneseq
    %v383 = vshrl.u32 %v382, 7
    %v384 = vsub.s32 0, %v383
    %v385 = vrot.slane %v377, %v384
    %v386 = vadd.f32 %v380, %v385
    %v387 = vtanh.pop %v386
    %s388 = sld [smem:[#allocation9 + $0x15]]
    %v389 = vstv %s388
    %v390 = vmul.f32 %v389, %v387
    %v391 = vadd.f32 %v376, %v390
    %v392 = vld [vmem:[#allocation7 + $0x16] sm:$0x1]
    %393 = vset.pattern.permute.xlu0 22
    %394 = vperm.xlu0 %393, %v60
    %v395 = vpop.permute.xlu0 %394
    %v397 = vlaneseq
    %v398 = vshrl.u32 %v397, 7
    %v399 = vsub.s32 0, %v398
    %v400 = vrot.slane %v392, %v399
    %v401 = vadd.f32 %v395, %v400
    %v402 = vtanh.pop %v401
    %s403 = sld [smem:[#allocation9 + $0x16]]
    %v404 = vstv %s403
    %v405 = vmul.f32 %v404, %v402
    %v406 = vadd.f32 %v391, %v405
    %v407 = vld [vmem:[#allocation7 + $0x17] sm:$0x1]
    %408 = vset.pattern.permute.xlu0 23
    %409 = vperm.xlu0 %408, %v60
    %v410 = vpop.permute.xlu0 %409
    %v412 = vlaneseq
    %v413 = vshrl.u32 %v412, 7
    %v414 = vsub.s32 0, %v413
    %v415 = vrot.slane %v407, %v414
    %v416 = vadd.f32 %v410, %v415
    %v417 = vtanh.pop %v416
    %s418 = sld [smem:[#allocation9 + $0x17]]
    %v419 = vstv %s418
    %v420 = vmul.f32 %v419, %v417
    %v421 = vadd.f32 %v406, %v420
    %v422 = vld [vmem:[#allocation7 + $0x18] sm:$0x1]
    %423 = vset.pattern.permute.xlu0 24
    %424 = vperm.xlu0 %423, %v60
    %v425 = vpop.permute.xlu0 %424
    %v427 = vlaneseq
    %v428 = vshrl.u32 %v427, 7
    %v429 = vsub.s32 0, %v428
    %v430 = vrot.slane %v422, %v429
    %v431 = vadd.f32 %v425, %v430
    %v432 = vtanh.pop %v431
    %s433 = sld [smem:[#allocation9 + $0x18]]
    %v434 = vstv %s433
    %v435 = vmul.f32 %v434, %v432
    %v436 = vadd.f32 %v421, %v435
    %v437 = vld [vmem:[#allocation7 + $0x19] sm:$0x1]
    %438 = vset.pattern.permute.xlu0 25
    %439 = vperm.xlu0 %438, %v60
    %v440 = vpop.permute.xlu0 %439
    %v442 = vlaneseq
    %v443 = vshrl.u32 %v442, 7
    %v444 = vsub.s32 0, %v443
    %v445 = vrot.slane %v437, %v444
    %v446 = vadd.f32 %v440, %v445
    %v447 = vtanh.pop %v446
    %s448 = sld [smem:[#allocation9 + $0x19]]
    %v449 = vstv %s448
    %v450 = vmul.f32 %v449, %v447
    %v451 = vadd.f32 %v436, %v450
    %v452 = vld [vmem:[#allocation7 + $0x1a] sm:$0x1]
    %453 = vset.pattern.permute.xlu0 26
    %454 = vperm.xlu0 %453, %v60
    %v455 = vpop.permute.xlu0 %454
    %v457 = vlaneseq
    %v458 = vshrl.u32 %v457, 7
    %v459 = vsub.s32 0, %v458
    %v460 = vrot.slane %v452, %v459
    %v461 = vadd.f32 %v455, %v460
    %v462 = vtanh.pop %v461
    %s463 = sld [smem:[#allocation9 + $0x1a]]
    %v464 = vstv %s463
    %v465 = vmul.f32 %v464, %v462
    %v466 = vadd.f32 %v451, %v465
    %v467 = vld [vmem:[#allocation7 + $0x1b] sm:$0x1]
    %468 = vset.pattern.permute.xlu0 27
    %469 = vperm.xlu0 %468, %v60
    %v470 = vpop.permute.xlu0 %469
    %v472 = vlaneseq
    %v473 = vshrl.u32 %v472, 7
    %v474 = vsub.s32 0, %v473
    %v475 = vrot.slane %v467, %v474
    %v476 = vadd.f32 %v470, %v475
    %v477 = vtanh.pop %v476
    %s478 = sld [smem:[#allocation9 + $0x1b]]
    %v479 = vstv %s478
    %v480 = vmul.f32 %v479, %v477
    %v481 = vadd.f32 %v466, %v480
    %v482 = vld [vmem:[#allocation7 + $0x1c] sm:$0x1]
    %483 = vset.pattern.permute.xlu0 28
    %484 = vperm.xlu0 %483, %v60
    %v485 = vpop.permute.xlu0 %484
    %v487 = vlaneseq
    %v488 = vshrl.u32 %v487, 7
    %v489 = vsub.s32 0, %v488
    %v490 = vrot.slane %v482, %v489
    %v491 = vadd.f32 %v485, %v490
    %v492 = vtanh.pop %v491
    %s493 = sld [smem:[#allocation9 + $0x1c]]
    %v494 = vstv %s493
    %v495 = vmul.f32 %v494, %v492
    %v496 = vadd.f32 %v481, %v495
    %v497 = vld [vmem:[#allocation7 + $0x1d] sm:$0x1]
    %498 = vset.pattern.permute.xlu0 29
    %499 = vperm.xlu0 %498, %v60
    %v500 = vpop.permute.xlu0 %499
    %v502 = vlaneseq
    %v503 = vshrl.u32 %v502, 7
    %v504 = vsub.s32 0, %v503
    %v505 = vrot.slane %v497, %v504
    %v506 = vadd.f32 %v500, %v505
    %v507 = vtanh.pop %v506
    %s508 = sld [smem:[#allocation9 + $0x1d]]
    %v509 = vstv %s508
    %v510 = vmul.f32 %v509, %v507
    %v511 = vadd.f32 %v496, %v510
    %v512 = vld [vmem:[#allocation7 + $0x1e] sm:$0x1]
    %513 = vset.pattern.permute.xlu0 30
    %514 = vperm.xlu0 %513, %v60
    %v515 = vpop.permute.xlu0 %514
    %v517 = vlaneseq
    %v518 = vshrl.u32 %v517, 7
    %v519 = vsub.s32 0, %v518
    %v520 = vrot.slane %v512, %v519
    %v521 = vadd.f32 %v515, %v520
    %v522 = vtanh.pop %v521
    %s523 = sld [smem:[#allocation9 + $0x1e]]
    %v524 = vstv %s523
    %v525 = vmul.f32 %v524, %v522
    %v526 = vadd.f32 %v511, %v525
    %v527 = vld [vmem:[#allocation7 + $0x1f] sm:$0x1]
    %528 = vset.pattern.permute.xlu0 31
    %529 = vperm.xlu0 %528, %v60
    %v530 = vpop.permute.xlu0 %529
    %v532 = vlaneseq
    %v533 = vshrl.u32 %v532, 7
    %v534 = vsub.s32 0, %v533
    %v535 = vrot.slane %v527, %v534
    %v536 = vadd.f32 %v530, %v535
    %v537 = vtanh.pop %v536
    %s538 = sld [smem:[#allocation9 + $0x1f]]
    %v539 = vstv %s538
    %v540 = vmul.f32 %v539, %v537
    %v541 = vadd.f32 %v526, %v540
    %542 = vst [vmem:[#allocation10] sm:$0xff] %v541
    // Predicated region
    $region30: #{tpu_custom_call.1} parent=1 // pred_check
      _
    $region31: #{tpu_custom_call.1} parent=1 // pred_check_branch
      %544 = sbr.rel (0) target = $region33
    $region32: #{tpu_custom_call.1} parent=1 // pred_region
      %s546 = ssub.s32 128, 128
      %547 = vsyncadd [#allocation5], %s546
      %s549 = sshll.u32 [#allocation10], 4
      %s550 = int_to_ptr.vmem [resolvable:$true] %s549
      %552 = dma.vmem_to_hbm [thread:$0]  %s550, 128, %s4, [#allocation5]
    $region33: #{tpu_custom_call.1} parent=1 // pred_fallthru
      _
    // Predicated region
    $region34: #{tpu_custom_call.1} parent=1 // pred_check
      _
    $region35: #{tpu_custom_call.1} parent=1 // pred_check_branch
      %554 = sbr.rel (0) target = $region37
    $region36: #{tpu_custom_call.1} parent=1 // pred_region
      %555 = dma.done [#allocation5], 128
    $region37: #{tpu_custom_call.1} parent=1 // pred_fallthru
      _
    %556 = vsyncpa [#allocation4], 1
    %557 = vsyncpa [#allocation8], 1
    %558 = vsyncpa [#allocation5], 1
    %559 = vsyncpa [#allocation6], 1

</llo_original>
